<compile_context>
chip_gen: v6e
topology: v6e:2x2x1
jax: 0.10.0
libtpu: 0.0.40
codegen_flags: <defaults>
</compile_context>

<pallas_src>
import jax
import jax.numpy as jnp
from jax.experimental import pallas as pl
from jax.experimental.pallas import tpu as pltpu

LN_EPS = 1e-5  # torch.nn.LayerNorm default


def _round_up(x, m):
    return ((x + m - 1) // m) * m


def _vmem_limit_bytes():
    # Raise the default scoped-VMEM limit (16 MiB v5e / 32 MiB v6e,v7x) so larger
    # batch tiles fit, while leaving headroom on v7x's 64 MiB physical VMEM.
    try:
        cap = pltpu.get_tpu_info().vmem_capacity_bytes
    except Exception:
        cap = 64 * 1024 * 1024
    return int(min(cap * 3 // 4, 64 * 1024 * 1024))


def gesdc_clf_kernel(ges_ref, dc_ref, w1_ref, vec_ref, seg_ref, w2_ref, b2_ref,
                     out_ref):
    """Fused [Linear -> per-branch LayerNorm -> SiLU -> Linear] for both branches."""
    mm = w1_ref.dtype
    # First layer: two MXU dots (== block-diagonal weight on concat([ges, dc])).
    h = jnp.dot(ges_ref[...].astype(mm), w1_ref[0],
                preferred_element_type=jnp.float32)              # (TB, 2Ip) f32
    h = h + jnp.dot(dc_ref[...].astype(mm), w1_ref[1],
                    preferred_element_type=jnp.float32)
    h = h + vec_ref[0:1, :]                                      # [b1_g | b1_d]

    # Per-branch LayerNorm stats: one MXU dot on [h ; h*h] with the resident
    # segment-mean matrix (1/I folded in). Padded lanes of h are exactly zero
    # (zero-padded W1 columns / b1 lanes), so the means cover only real features.
    tb = h.shape[0]
    stats = jnp.dot(jnp.concatenate([h, h * h], axis=0), seg_ref[...],
                    preferred_element_type=jnp.float32)          # (2*TB, 2Ip)
    mean = stats[:tb, :]
    # Single-pass variance E[h^2] - mean^2; matches the two-pass reference at
    # these scales but can lose precision if |mean| >> std on real checkpoints.
    var = stats[tb:, :] - mean * mean
    hn = (h - mean) * jax.lax.rsqrt(var + LN_EPS)
    hn = hn * vec_ref[1:2, :] + vec_ref[2:3, :]                  # gamma, beta

    act = hn * jax.nn.sigmoid(hn)                                # SiLU (Dropout = id)

    # Second layer: stacked (2Ip, L_pad) weight, summed bias.
    out = jnp.dot(act.astype(w2_ref.dtype), w2_ref[...],
                  preferred_element_type=jnp.float32) + b2_ref[...]
    out_ref[...] = out.astype(out_ref.dtype)


def pack_params(params, *, use_bf16_matmul=True):
    """Pack/pad parameters into kernel operands. Call ONCE per parameter set and
    reuse the result across forward calls (avoids re-materializing padded weights
    in HBM every step)."""
    H, I = params["wg1"].shape
    L = params["wg2"].shape[1]
    I_pad = _round_up(I, 64)       # per-half pad so 2*I_pad is a lane multiple (128)
    L_pad = _round_up(L, 128)      # lane-dense output slab
    f32 = jnp.float32
    mm_dtype = jnp.bfloat16 if use_bf16_matmul else f32

    # First-layer weight as two (H, 2*I_pad) row blocks: [wg1 | 0] and [0 | wd1].
    w1 = jnp.zeros((2, H, 2 * I_pad), f32)
    w1 = w1.at[0, :, :I].set(params["wg1"].astype(f32))
    w1 = w1.at[1, :, I_pad:I_pad + I].set(params["wd1"].astype(f32))

    def _lane(v, width):
        v = jnp.asarray(v, f32).reshape(1, -1)
        return jnp.pad(v, ((0, 0), (0, width - v.shape[1])))

    # row 0 = [b1_g | b1_d], row 1 = [gamma_g | gamma_d], row 2 = [beta_g | beta_d]
    vec = jnp.concatenate([
        jnp.concatenate([_lane(params["bg1"], I_pad), _lane(params["bd1"], I_pad)], 1),
        jnp.concatenate([_lane(params["gg"], I_pad), _lane(params["gd"], I_pad)], 1),
        jnp.concatenate([_lane(params["betg"], I_pad), _lane(params["betd"], I_pad)], 1),
    ], axis=0)

    # Per-branch segment-mean matrix (constant, resident input), 1/I folded in.
    two_ip = 2 * I_pad
    r = jax.lax.broadcasted_iota(jnp.int32, (two_ip, two_ip), 0) >= I_pad
    c = jax.lax.broadcasted_iota(jnp.int32, (two_ip, two_ip), 1) >= I_pad
    seg = jnp.where(r == c, 1.0 / I, 0.0).astype(f32)

    # Stacked second-layer weight and summed bias.
    w2 = jnp.zeros((2 * I_pad, L_pad), f32)
    w2 = w2.at[:I, :L].set(params["wg2"].astype(f32))
    w2 = w2.at[I_pad:I_pad + I, :L].set(params["wd2"].astype(f32))
    b2 = jnp.zeros((1, L_pad), f32).at[:, :L].set(
        (params["bg2"] + params["bd2"]).reshape(1, L).astype(f32))

    return {
        "w1": w1.astype(mm_dtype),   # MXU operands may be bf16
        "vec": vec,                  # LayerNorm affine/bias stays f32
        "seg": seg,                  # stats matmul stays f32
        "w2": w2.astype(mm_dtype),
        "b2": b2,
    }


def gesdc_clf(ges_latent, dc_latent, packed, *, logit_dim, batch_tile=1024,
              out_dtype=jnp.float32):
    """forward(ges, dc) = MLPLN_g(ges) + MLPLN_d(dc), fused into one Pallas call."""
    B, H = ges_latent.shape
    assert dc_latent.shape == (B, H)
    w1, vec, seg, w2, b2 = (packed["w1"], packed["vec"], packed["seg"],
                            packed["w2"], packed["b2"])
    L_pad = w2.shape[1]

    # Batch tiling: biggest tile (amortizes ~0.35us/step overhead), but keep
    # >= 2 grid steps when the batch allows it so both v7x TensorCores get work
    # (harmless on single-TC v5e/v6e).
    B8 = _round_up(B, 8)
    TB = min(_round_up(batch_tile, 8), B8)
    if B8 > 8 and (B8 + TB - 1) // TB < 2:
        TB = _round_up((B8 + 1) // 2, 8)
    B_pad = _round_up(B, TB)

    mm_dtype = w1.dtype
    x_g = ges_latent.astype(mm_dtype)   # halves activation HBM bytes when bf16
    x_d = dc_latent.astype(mm_dtype)
    if B_pad != B:
        x_g = jnp.pad(x_g, ((0, B_pad - B), (0, 0)))
        x_d = jnp.pad(x_d, ((0, B_pad - B), (0, 0)))

    def build_call(single_buffer_weights):
        res = dict(pipeline_mode=pl.Buffered(1)) if single_buffer_weights else {}
        return pl.pallas_call(
            gesdc_clf_kernel,
            out_shape=jax.ShapeDtypeStruct((B_pad, L_pad), out_dtype),
            grid=(B_pad // TB,),
            in_specs=[
                pl.BlockSpec((TB, H), lambda i: (i, 0)),          # batch-tiled ges
                pl.BlockSpec((TB, H), lambda i: (i, 0)),          # batch-tiled dc
                pl.BlockSpec(w1.shape, lambda i: (0, 0, 0), **res),  # resident weights
                pl.BlockSpec(vec.shape, lambda i: (0, 0), **res),
                pl.BlockSpec(seg.shape, lambda i: (0, 0), **res),
                pl.BlockSpec(w2.shape, lambda i: (0, 0), **res),
                pl.BlockSpec(b2.shape, lambda i: (0, 0), **res),
            ],
            out_specs=pl.BlockSpec((TB, L_pad), lambda i: (i, 0)),
            compiler_params=pltpu.CompilerParams(
                dimension_semantics=("parallel",),
                vmem_limit_bytes=_vmem_limit_bytes()),
        )

    try:
        out = build_call(True)(x_g, x_d, w1, vec, seg, w2, b2)
    except Exception:
        # Fallback if this jax build rejects pipeline_mode=pl.Buffered(1) on the
        # top-level pallas_call: weights get default double buffering (correct,
        # just 2x resident-weight VMEM).
        out = build_call(False)(x_g, x_d, w1, vec, seg, w2, b2)

    # Lane-dense slab -> logical logits. In a full model, run under the model's
    # jit so this slice does not become a standalone HBM copy.
    return out[:B, :logit_dim]


def init_params(key, enc_hiddim, intl_dim, logit_dim):
    ks = jax.random.split(key, 8)
    scale1 = 1.0 / jnp.sqrt(enc_hiddim)
    scale2 = 1.0 / jnp.sqrt(intl_dim)
    return {
        # g branch
        "wg1": jax.random.normal(ks[0], (enc_hiddim, intl_dim), jnp.float32) * scale1,
        "bg1": jax.random.normal(ks[1], (1, intl_dim), jnp.float32) * 0.01,
        "gg": jnp.ones((1, intl_dim), jnp.float32),
        "betg": jnp.zeros((1, intl_dim), jnp.float32),
        "wg2": jax.random.normal(ks[2], (intl_dim, logit_dim), jnp.float32) * scale2,
        "bg2": jax.random.normal(ks[3], (1, logit_dim), jnp.float32) * 0.01,
        # d branch
        "wd1": jax.random.normal(ks[4], (enc_hiddim, intl_dim), jnp.float32) * scale1,
        "bd1": jax.random.normal(ks[5], (1, intl_dim), jnp.float32) * 0.01,
        "gd": jnp.ones((1, intl_dim), jnp.float32),
        "betd": jnp.zeros((1, intl_dim), jnp.float32),
        "wd2": jax.random.normal(ks[6], (intl_dim, logit_dim), jnp.float32) * scale2,
        "bd2": jax.random.normal(ks[7], (1, logit_dim), jnp.float32) * 0.01,
    }


def reference(ges, dc, p):
    def branch(x, w1, b1, g, b, w2, b2):
        h = x @ w1 + b1
        mu = h.mean(-1, keepdims=True)
        var = ((h - mu) ** 2).mean(-1, keepdims=True)
        hn = (h - mu) / jnp.sqrt(var + LN_EPS) * g + b
        a = hn * jax.nn.sigmoid(hn)
        return a @ w2 + b2
    return (branch(ges, p["wg1"], p["bg1"], p["gg"], p["betg"], p["wg2"], p["bg2"]) +
            branch(dc, p["wd1"], p["bd1"], p["gd"], p["betd"], p["wd2"], p["bd2"]))


if __name__ == "__main__":
    B, ENC_HIDDIM, INTL_DIM, LOGIT_DIM = 8, 32, 64, 16

    key = jax.random.PRNGKey(0)
    k_ges, k_dc, k_p = jax.random.split(key, 3)
    ges_latent = jax.random.normal(k_ges, (B, ENC_HIDDIM), jnp.float32)
    dc_latent = jax.random.normal(k_dc, (B, ENC_HIDDIM), jnp.float32)
    params = init_params(k_p, ENC_HIDDIM, INTL_DIM, LOGIT_DIM)
    ref = reference(ges_latent, dc_latent, params)

    # Default fast path: bf16 MXU operands (f32 accumulation + f32 LN/SiLU math).
    packed_bf16 = pack_params(params, use_bf16_matmul=True)
    out_bf16 = jax.block_until_ready(
        gesdc_clf(ges_latent, dc_latent, packed_bf16, logit_dim=LOGIT_DIM))
    assert out_bf16.shape == (B, LOGIT_DIM)
    assert jnp.allclose(out_bf16, ref, atol=8e-2, rtol=8e-2)

    # Full-f32 path for bit-accuracy sanity.
    packed_f32 = pack_params(params, use_bf16_matmul=False)
    out_f32 = jax.block_until_ready(
        gesdc_clf(ges_latent, dc_latent, packed_f32, logit_dim=LOGIT_DIM))
    assert out_f32.shape == (B, LOGIT_DIM)
    assert jnp.allclose(out_f32, ref, atol=2e-4, rtol=2e-4)

    print("KERNEL_OK")
</pallas_src>

<mosaic_0001>
module attributes {stable_mosaic.version = 11 : i64} {
  func.func @gesdc_clf_kernel(%arg0: i32, %arg1: memref<8x32xbf16, #tpu.memory_space<vmem>>, %arg2: memref<8x32xbf16, #tpu.memory_space<vmem>>, %arg3: memref<2x32x128xbf16, #tpu.memory_space<vmem>>, %arg4: memref<3x128xf32, #tpu.memory_space<vmem>>, %arg5: memref<128x128xf32, #tpu.memory_space<vmem>>, %arg6: memref<128x128xbf16, #tpu.memory_space<vmem>>, %arg7: memref<1x128xf32, #tpu.memory_space<vmem>>, %arg8: memref<8x128xf32, #tpu.memory_space<vmem>>) attributes {dimension_semantics = [#tpu.dimension_semantics<parallel>], iteration_bounds = array<i64: 1>, scalar_prefetch = 0 : i64, scratch_operands = 0 : i64, tpu.core_type = #tpu.core_type<tc>, window_params = [{transform_indices = @transform_0, window_bounds = array<i64: 8, 32>}, {transform_indices = @transform_1, window_bounds = array<i64: 8, 32>}, {pipeline_mode = #tpu.pipeline_mode<synchronous>, transform_indices = @transform_2, window_bounds = array<i64: 2, 32, 128>}, {pipeline_mode = #tpu.pipeline_mode<synchronous>, transform_indices = @transform_3, window_bounds = array<i64: 3, 128>}, {pipeline_mode = #tpu.pipeline_mode<synchronous>, transform_indices = @transform_4, window_bounds = array<i64: 128, 128>}, {pipeline_mode = #tpu.pipeline_mode<synchronous>, transform_indices = @transform_5, window_bounds = array<i64: 128, 128>}, {pipeline_mode = #tpu.pipeline_mode<synchronous>, transform_indices = @transform_6, window_bounds = array<i64: 1, 128>}, {transform_indices = @transform_7, window_bounds = array<i64: 8, 128>}]} {
    %c0 = arith.constant 0 : index
    %c0_0 = arith.constant 0 : index
    %0 = vector.load %arg1[%c0, %c0_0] : memref<8x32xbf16, #tpu.memory_space<vmem>>, vector<8x32xbf16>
    %c0_1 = arith.constant 0 : index
    %c0_2 = arith.constant 0 : index
    %c0_3 = arith.constant 0 : index
    %1 = vector.load %arg3[%c0_1, %c0_2, %c0_3] : memref<2x32x128xbf16, #tpu.memory_space<vmem>>, vector<1x32x128xbf16>
    %2 = vector.shape_cast %1 : vector<1x32x128xbf16> to vector<32x128xbf16>
    %cst = arith.constant dense<0.000000e+00> : vector<8x128xf32>
    %3 = tpu.matmul %0, %2, %cst {dimension_numbers = #tpu.dot_dimension_numbers<[1], [0], [0], [1], [0, 0, 1, 1], [], []>} : vector<8x32xbf16>, vector<32x128xbf16>, vector<8x128xf32> -> vector<8x128xf32>
    %c0_4 = arith.constant 0 : index
    %c0_5 = arith.constant 0 : index
    %4 = vector.load %arg2[%c0_4, %c0_5] : memref<8x32xbf16, #tpu.memory_space<vmem>>, vector<8x32xbf16>
    %c1 = arith.constant 1 : index
    %c0_6 = arith.constant 0 : index
    %c0_7 = arith.constant 0 : index
    %5 = vector.load %arg3[%c1, %c0_6, %c0_7] : memref<2x32x128xbf16, #tpu.memory_space<vmem>>, vector<1x32x128xbf16>
    %6 = vector.shape_cast %5 : vector<1x32x128xbf16> to vector<32x128xbf16>
    %cst_8 = arith.constant dense<0.000000e+00> : vector<8x128xf32>
    %7 = tpu.matmul %4, %6, %cst_8 {dimension_numbers = #tpu.dot_dimension_numbers<[1], [0], [0], [1], [0, 0, 1, 1], [], []>} : vector<8x32xbf16>, vector<32x128xbf16>, vector<8x128xf32> -> vector<8x128xf32>
    %8 = arith.addf %3, %7 : vector<8x128xf32>
    %c0_9 = arith.constant 0 : index
    %c0_10 = arith.constant 0 : index
    %9 = vector.load %arg4[%c0_9, %c0_10] : memref<3x128xf32, #tpu.memory_space<vmem>>, vector<1x128xf32>
    %10 = vector.broadcast %9 : vector<1x128xf32> to vector<8x128xf32>
    %11 = arith.addf %8, %10 : vector<8x128xf32>
    %12 = arith.mulf %11, %11 : vector<8x128xf32>
    %13 = tpu.concatenate %11, %12 in 0 : vector<8x128xf32>, vector<8x128xf32> -> vector<16x128xf32>
    %c0_11 = arith.constant 0 : index
    %c0_12 = arith.constant 0 : index
    %14 = vector.load %arg5[%c0_11, %c0_12] : memref<128x128xf32, #tpu.memory_space<vmem>>, vector<128x128xf32>
    %cst_13 = arith.constant dense<0.000000e+00> : vector<16x128xf32>
    %15 = tpu.matmul %13, %14, %cst_13 {dimension_numbers = #tpu.dot_dimension_numbers<[1], [0], [0], [1], [0, 0, 1, 1], [], []>} : vector<16x128xf32>, vector<128x128xf32>, vector<16x128xf32> -> vector<16x128xf32>
    %16 = vector.extract_strided_slice %15 {offsets = [0, 0], sizes = [8, 128], strides = [1, 1]} : vector<16x128xf32> to vector<8x128xf32>
    %17 = vector.extract_strided_slice %15 {offsets = [8, 0], sizes = [8, 128], strides = [1, 1]} : vector<16x128xf32> to vector<8x128xf32>
    %18 = arith.mulf %16, %16 : vector<8x128xf32>
    %19 = arith.subf %17, %18 : vector<8x128xf32>
    %20 = arith.subf %11, %16 : vector<8x128xf32>
    %cst_14 = arith.constant 9.99999974E-6 : f32
    %21 = vector.broadcast %cst_14 : f32 to vector<8x128xf32>
    %22 = arith.addf %19, %21 : vector<8x128xf32>
    %23 = math.rsqrt %22 : vector<8x128xf32>
    %24 = arith.mulf %20, %23 : vector<8x128xf32>
    %c1_15 = arith.constant 1 : index
    %c0_16 = arith.constant 0 : index
    %25 = vector.load %arg4[%c1_15, %c0_16] : memref<3x128xf32, #tpu.memory_space<vmem>>, vector<1x128xf32>
    %26 = vector.broadcast %25 : vector<1x128xf32> to vector<8x128xf32>
    %27 = arith.mulf %24, %26 : vector<8x128xf32>
    %c2 = arith.constant 2 : index
    %c0_17 = arith.constant 0 : index
    %28 = vector.load %arg4[%c2, %c0_17] : memref<3x128xf32, #tpu.memory_space<vmem>>, vector<1x128xf32>
    %29 = vector.broadcast %28 : vector<1x128xf32> to vector<8x128xf32>
    %30 = arith.addf %27, %29 : vector<8x128xf32>
    %31 = arith.negf %30 : vector<8x128xf32>
    %32 = math.exp %31 : vector<8x128xf32>
    %cst_18 = arith.constant 1.000000e+00 : f32
    %33 = vector.broadcast %cst_18 : f32 to vector<8x128xf32>
    %34 = arith.addf %33, %32 : vector<8x128xf32>
    %35 = arith.divf %33, %34 : vector<8x128xf32>
    %36 = arith.mulf %30, %35 : vector<8x128xf32>
    %37 = arith.truncf %36 : vector<8x128xf32> to vector<8x128xbf16>
    %c0_19 = arith.constant 0 : index
    %c0_20 = arith.constant 0 : index
    %38 = vector.load %arg6[%c0_19, %c0_20] : memref<128x128xbf16, #tpu.memory_space<vmem>>, vector<128x128xbf16>
    %cst_21 = arith.constant dense<0.000000e+00> : vector<8x128xf32>
    %39 = tpu.matmul %37, %38, %cst_21 {dimension_numbers = #tpu.dot_dimension_numbers<[1], [0], [0], [1], [0, 0, 1, 1], [], []>} : vector<8x128xbf16>, vector<128x128xbf16>, vector<8x128xf32> -> vector<8x128xf32>
    %c0_22 = arith.constant 0 : index
    %c0_23 = arith.constant 0 : index
    %40 = vector.load %arg7[%c0_22, %c0_23] : memref<1x128xf32, #tpu.memory_space<vmem>>, vector<1x128xf32>
    %41 = vector.broadcast %40 : vector<1x128xf32> to vector<8x128xf32>
    %42 = arith.addf %39, %41 : vector<8x128xf32>
    %c0_24 = arith.constant 0 : index
    %c0_25 = arith.constant 0 : index
    %43 = vector.load %arg8[%c0_24, %c0_25] : memref<8x128xf32, #tpu.memory_space<vmem>>, vector<8x128xf32>
    tpu.vector_store %arg8[%c0_24, %c0_25], %42 {strides = array<i32>} : memref<8x128xf32, #tpu.memory_space<vmem>>, vector<8x128xf32>,
    return
  }
  func.func @transform_0(%arg0: i32) -> (i32, i32) {
    %c0_i32 = arith.constant 0 : i32
    %c0_i32_0 = arith.constant 0 : i32
    return %arg0, %c0_i32 : i32, i32
  }
  func.func @transform_1(%arg0: i32) -> (i32, i32) {
    %c0_i32 = arith.constant 0 : i32
    %c0_i32_0 = arith.constant 0 : i32
    return %arg0, %c0_i32 : i32, i32
  }
  func.func @transform_2(%arg0: i32) -> (i32, i32, i32) {
    %c0_i32 = arith.constant 0 : i32
    %c0_i32_0 = arith.constant 0 : i32
    %c0_i32_1 = arith.constant 0 : i32
    %c0_i32_2 = arith.constant 0 : i32
    return %c0_i32, %c0_i32_0, %c0_i32_1 : i32, i32, i32
  }
  func.func @transform_3(%arg0: i32) -> (i32, i32) {
    %c0_i32 = arith.constant 0 : i32
    %c0_i32_0 = arith.constant 0 : i32
    %c0_i32_1 = arith.constant 0 : i32
    return %c0_i32, %c0_i32_0 : i32, i32
  }
  func.func @transform_4(%arg0: i32) -> (i32, i32) {
    %c0_i32 = arith.constant 0 : i32
    %c0_i32_0 = arith.constant 0 : i32
    %c0_i32_1 = arith.constant 0 : i32
    return %c0_i32, %c0_i32_0 : i32, i32
  }
  func.func @transform_5(%arg0: i32) -> (i32, i32) {
    %c0_i32 = arith.constant 0 : i32
    %c0_i32_0 = arith.constant 0 : i32
    %c0_i32_1 = arith.constant 0 : i32
    return %c0_i32, %c0_i32_0 : i32, i32
  }
  func.func @transform_6(%arg0: i32) -> (i32, i32) {
    %c0_i32 = arith.constant 0 : i32
    %c0_i32_0 = arith.constant 0 : i32
    %c0_i32_1 = arith.constant 0 : i32
    return %c0_i32, %c0_i32_0 : i32, i32
  }
  func.func @transform_7(%arg0: i32) -> (i32, i32) {
    %c0_i32 = arith.constant 0 : i32
    %c0_i32_0 = arith.constant 0 : i32
    return %arg0, %c0_i32 : i32, i32
  }
}

module attributes {stable_mosaic.version = 11 : i64} {
  func.func @gesdc_clf_kernel(%arg0: i32, %arg1: memref<8x32xbf16, #tpu.memory_space<vmem>>, %arg2: memref<8x32xbf16, #tpu.memory_space<vmem>>, %arg3: memref<2x32x128xbf16, #tpu.memory_space<vmem>>, %arg4: memref<3x128xf32, #tpu.memory_space<vmem>>, %arg5: memref<128x128xf32, #tpu.memory_space<vmem>>, %arg6: memref<128x128xbf16, #tpu.memory_space<vmem>>, %arg7: memref<1x128xf32, #tpu.memory_space<vmem>>, %arg8: memref<8x128xf32, #tpu.memory_space<vmem>>) attributes {dimension_semantics = [#tpu.dimension_semantics<parallel>], iteration_bounds = array<i64: 1>, scalar_prefetch = 0 : i64, scratch_operands = 0 : i64, tpu.core_type = #tpu.core_type<tc>, window_params = [{transform_indices = @transform_0, window_bounds = array<i64: 8, 32>}, {transform_indices = @transform_1, window_bounds = array<i64: 8, 32>}, {pipeline_mode = #tpu.pipeline_mode<synchronous>, transform_indices = @transform_2, window_bounds = array<i64: 2, 32, 128>}, {pipeline_mode = #tpu.pipeline_mode<synchronous>, transform_indices = @transform_3, window_bounds = array<i64: 3, 128>}, {pipeline_mode = #tpu.pipeline_mode<synchronous>, transform_indices = @transform_4, window_bounds = array<i64: 128, 128>}, {pipeline_mode = #tpu.pipeline_mode<synchronous>, transform_indices = @transform_5, window_bounds = array<i64: 128, 128>}, {pipeline_mode = #tpu.pipeline_mode<synchronous>, transform_indices = @transform_6, window_bounds = array<i64: 1, 128>}, {transform_indices = @transform_7, window_bounds = array<i64: 8, 128>}]} {
    %c0 = arith.constant 0 : index
    %c0_0 = arith.constant 0 : index
    %0 = vector.load %arg1[%c0, %c0_0] : memref<8x32xbf16, #tpu.memory_space<vmem>>, vector<8x32xbf16>
    %c0_1 = arith.constant 0 : index
    %c0_2 = arith.constant 0 : index
    %c0_3 = arith.constant 0 : index
    %1 = vector.load %arg3[%c0_1, %c0_2, %c0_3] : memref<2x32x128xbf16, #tpu.memory_space<vmem>>, vector<1x32x128xbf16>
    %2 = vector.shape_cast %1 : vector<1x32x128xbf16> to vector<32x128xbf16>
    %cst = arith.constant dense<0.000000e+00> : vector<8x128xf32>
    %3 = tpu.matmul %0, %2, %cst {dimension_numbers = #tpu.dot_dimension_numbers<[1], [0], [0], [1], [0, 0, 1, 1], [], []>} : vector<8x32xbf16>, vector<32x128xbf16>, vector<8x128xf32> -> vector<8x128xf32>
    %c0_4 = arith.constant 0 : index
    %c0_5 = arith.constant 0 : index
    %4 = vector.load %arg2[%c0_4, %c0_5] : memref<8x32xbf16, #tpu.memory_space<vmem>>, vector<8x32xbf16>
    %c1 = arith.constant 1 : index
    %c0_6 = arith.constant 0 : index
    %c0_7 = arith.constant 0 : index
    %5 = vector.load %arg3[%c1, %c0_6, %c0_7] : memref<2x32x128xbf16, #tpu.memory_space<vmem>>, vector<1x32x128xbf16>
    %6 = vector.shape_cast %5 : vector<1x32x128xbf16> to vector<32x128xbf16>
    %cst_8 = arith.constant dense<0.000000e+00> : vector<8x128xf32>
    %7 = tpu.matmul %4, %6, %cst_8 {dimension_numbers = #tpu.dot_dimension_numbers<[1], [0], [0], [1], [0, 0, 1, 1], [], []>} : vector<8x32xbf16>, vector<32x128xbf16>, vector<8x128xf32> -> vector<8x128xf32>
    %8 = arith.addf %3, %7 : vector<8x128xf32>
    %c0_9 = arith.constant 0 : index
    %c0_10 = arith.constant 0 : index
    %9 = vector.load %arg4[%c0_9, %c0_10] : memref<3x128xf32, #tpu.memory_space<vmem>>, vector<1x128xf32>
    %10 = vector.broadcast %9 : vector<1x128xf32> to vector<8x128xf32>
    %11 = arith.addf %8, %10 : vector<8x128xf32>
    %12 = arith.mulf %11, %11 : vector<8x128xf32>
    %13 = tpu.concatenate %11, %12 in 0 : vector<8x128xf32>, vector<8x128xf32> -> vector<16x128xf32>
    %c0_11 = arith.constant 0 : index
    %c0_12 = arith.constant 0 : index
    %14 = vector.load %arg5[%c0_11, %c0_12] : memref<128x128xf32, #tpu.memory_space<vmem>>, vector<128x128xf32>
    %cst_13 = arith.constant dense<0.000000e+00> : vector<16x128xf32>
    %15 = tpu.matmul %13, %14, %cst_13 {dimension_numbers = #tpu.dot_dimension_numbers<[1], [0], [0], [1], [0, 0, 1, 1], [], []>} : vector<16x128xf32>, vector<128x128xf32>, vector<16x128xf32> -> vector<16x128xf32>
    %16 = vector.extract_strided_slice %15 {offsets = [0, 0], sizes = [8, 128], strides = [1, 1]} : vector<16x128xf32> to vector<8x128xf32>
    %17 = vector.extract_strided_slice %15 {offsets = [8, 0], sizes = [8, 128], strides = [1, 1]} : vector<16x128xf32> to vector<8x128xf32>
    %18 = arith.mulf %16, %16 : vector<8x128xf32>
    %19 = arith.subf %17, %18 : vector<8x128xf32>
    %20 = arith.subf %11, %16 : vector<8x128xf32>
    %cst_14 = arith.constant 9.99999974E-6 : f32
    %21 = vector.broadcast %cst_14 : f32 to vector<8x128xf32>
    %22 = arith.addf %19, %21 : vector<8x128xf32>
    %23 = math.rsqrt %22 : vector<8x128xf32>
    %24 = arith.mulf %20, %23 : vector<8x128xf32>
    %c1_15 = arith.constant 1 : index
    %c0_16 = arith.constant 0 : index
    %25 = vector.load %arg4[%c1_15, %c0_16] : memref<3x128xf32, #tpu.memory_space<vmem>>, vector<1x128xf32>
    %26 = vector.broadcast %25 : vector<1x128xf32> to vector<8x128xf32>
    %27 = arith.mulf %24, %26 : vector<8x128xf32>
    %c2 = arith.constant 2 : index
    %c0_17 = arith.constant 0 : index
    %28 = vector.load %arg4[%c2, %c0_17] : memref<3x128xf32, #tpu.memory_space<vmem>>, vector<1x128xf32>
    %29 = vector.broadcast %28 : vector<1x128xf32> to vector<8x128xf32>
    %30 = arith.addf %27, %29 : vector<8x128xf32>
    %31 = arith.negf %30 : vector<8x128xf32>
    %32 = math.exp %31 : vector<8x128xf32>
    %cst_18 = arith.constant 1.000000e+00 : f32
    %33 = vector.broadcast %cst_18 : f32 to vector<8x128xf32>
    %34 = arith.addf %33, %32 : vector<8x128xf32>
    %35 = arith.divf %33, %34 : vector<8x128xf32>
    %36 = arith.mulf %30, %35 : vector<8x128xf32>
    %37 = arith.truncf %36 : vector<8x128xf32> to vector<8x128xbf16>
    %c0_19 = arith.constant 0 : index
    %c0_20 = arith.constant 0 : index
    %38 = vector.load %arg6[%c0_19, %c0_20] : memref<128x128xbf16, #tpu.memory_space<vmem>>, vector<128x128xbf16>
    %cst_21 = arith.constant dense<0.000000e+00> : vector<8x128xf32>
    %39 = tpu.matmul %37, %38, %cst_21 {dimension_numbers = #tpu.dot_dimension_numbers<[1], [0], [0], [1], [0, 0, 1, 1], [], []>} : vector<8x128xbf16>, vector<128x128xbf16>, vector<8x128xf32> -> vector<8x128xf32>
    %c0_22 = arith.constant 0 : index
    %c0_23 = arith.constant 0 : index
    %40 = vector.load %arg7[%c0_22, %c0_23] : memref<1x128xf32, #tpu.memory_space<vmem>>, vector<1x128xf32>
    %41 = vector.broadcast %40 : vector<1x128xf32> to vector<8x128xf32>
    %42 = arith.addf %39, %41 : vector<8x128xf32>
    %c0_24 = arith.constant 0 : index
    %c0_25 = arith.constant 0 : index
    %43 = vector.load %arg8[%c0_24, %c0_25] : memref<8x128xf32, #tpu.memory_space<vmem>>, vector<8x128xf32>
    tpu.vector_store %arg8[%c0_24, %c0_25], %42 {strides = array<i32>} : memref<8x128xf32, #tpu.memory_space<vmem>>, vector<8x128xf32>,
    return
  }
  func.func @transform_0(%arg0: i32) -> (i32, i32) {
    %c0_i32 = arith.constant 0 : i32
    %c0_i32_0 = arith.constant 0 : i32
    return %arg0, %c0_i32 : i32, i32
  }
  func.func @transform_1(%arg0: i32) -> (i32, i32) {
    %c0_i32 = arith.constant 0 : i32
    %c0_i32_0 = arith.constant 0 : i32
    return %arg0, %c0_i32 : i32, i32
  }
  func.func @transform_2(%arg0: i32) -> (i32, i32, i32) {
    %c0_i32 = arith.constant 0 : i32
    %c0_i32_0 = arith.constant 0 : i32
    %c0_i32_1 = arith.constant 0 : i32
    %c0_i32_2 = arith.constant 0 : i32
    return %c0_i32, %c0_i32_0, %c0_i32_1 : i32, i32, i32
  }
  func.func @transform_3(%arg0: i32) -> (i32, i32) {
    %c0_i32 = arith.constant 0 : i32
    %c0_i32_0 = arith.constant 0 : i32
    %c0_i32_1 = arith.constant 0 : i32
    return %c0_i32, %c0_i32_0 : i32, i32
  }
  func.func @transform_4(%arg0: i32) -> (i32, i32) {
    %c0_i32 = arith.constant 0 : i32
    %c0_i32_0 = arith.constant 0 : i32
    %c0_i32_1 = arith.constant 0 : i32
    return %c0_i32, %c0_i32_0 : i32, i32
  }
  func.func @transform_5(%arg0: i32) -> (i32, i32) {
    %c0_i32 = arith.constant 0 : i32
    %c0_i32_0 = arith.constant 0 : i32
    %c0_i32_1 = arith.constant 0 : i32
    return %c0_i32, %c0_i32_0 : i32, i32
  }
  func.func @transform_6(%arg0: i32) -> (i32, i32) {
    %c0_i32 = arith.constant 0 : i32
    %c0_i32_0 = arith.constant 0 : i32
    %c0_i32_1 = arith.constant 0 : i32
    return %c0_i32, %c0_i32_0 : i32, i32
  }
  func.func @transform_7(%arg0: i32) -> (i32, i32) {
    %c0_i32 = arith.constant 0 : i32
    %c0_i32_0 = arith.constant 0 : i32
    return %arg0, %c0_i32 : i32, i32
  }
}

</mosaic_0001>

<llo_original>
// kernel: tpu_custom_call.1
$region0: #{tpu_custom_call.1}
  #allocation0 [shape = 'u32[]', space=smem, size = 0x4, offset = 0x4, fixed_abs, tag = 'smem constant byte address 0x4 - core index']
  #allocation1 [shape = 'u32[144,128]{1,0:T(1,128)}', space=vmem, size = 0x12000, scoped, tag = 'internal scratch']
  %s0 = inlined_call_operand.hbm [shape: bf16[8,32], index: 0, kind: input, shape index: {}]
  %s1 = inlined_call_operand.hbm [shape: bf16[8,32], index: 1, kind: input, shape index: {}]
  %s2 = inlined_call_operand.hbm [shape: bf16[2,32,128], index: 2, kind: input, shape index: {}]
  %s3 = inlined_call_operand.vmem [shape: f32[3,128], index: 3, kind: input, shape index: {}]
  %s4 = inlined_call_operand.hbm [shape: f32[128,128], index: 4, kind: input, shape index: {}]
  %s5 = inlined_call_operand.hbm [shape: bf16[128,128], index: 5, kind: input, shape index: {}]
  %s6 = inlined_call_operand.vmem [shape: f32[1,128], index: 6, kind: input, shape index: {}]
  %s7 = inlined_call_operand.hbm [shape: f32[8,128], index: 7, kind: output, shape index: {}]
  %s8 = sld [smem:[#allocation0]]
  $region58: #{tpu_custom_call.1} parent=0
    _
  %s10 = ssub.s32 1, %s8
  %s11 = scalar_select 0, %s10, %s8
  $region1: #{tpu_custom_call.1} parent=0
    #allocation2 [shape = 'u8[2048]{0}', space=vmem, size = 0x800, scoped, tag = 'input window, operand 0, single buffered']
    #allocation3 [shape = 's32[1]{0}', space=sflag, size = 0x4, scoped, tag = 'scoped memory for tpu_custom_call.1']
    #allocation4 [shape = 's32[1]{0}', space=sflag, size = 0x4, scoped, tag = 'scoped memory for tpu_custom_call.1']
    #allocation5 [shape = 'u8[2048]{0}', space=vmem, size = 0x800, scoped, tag = 'input window, operand 1, single buffered']
    #allocation6 [shape = 's32[1]{0}', space=sflag, size = 0x4, scoped, tag = 'scoped memory for tpu_custom_call.1']
    #allocation7 [shape = 'u8[16384]{0}', space=vmem, size = 0x4000, scoped, tag = 'input window, operand 2, single buffered']
    #allocation8 [shape = 'u8[65536]{0}', space=vmem, size = 0x10000, scoped, tag = 'input window, operand 4, single buffered']
    #allocation9 [shape = 's32[1]{0}', space=sflag, size = 0x4, scoped, tag = 'scoped memory for tpu_custom_call.1']
    #allocation10 [shape = 'u8[32768]{0}', space=vmem, size = 0x8000, scoped, tag = 'input window, operand 5, single buffered']
    #allocation11 [shape = 'u8[4096]{0}', space=vmem, size = 0x1000, scoped, tag = 'output window, operand 0, single buffered']
    %12 = vsyncpa [#allocation3], 0
    %13 = vsyncpa [#allocation6], 0
    %14 = vsyncpa [#allocation9], 0
    %15 = vsyncpa [#allocation4], 0
    // Predicated region
    $region2: #{tpu_custom_call.1} parent=1 // pred_check
      _
    $region3: #{tpu_custom_call.1} parent=1 // pred_check_branch
      %17 = sbr.rel (0) target = $region5
    $region4: #{tpu_custom_call.1} parent=1 // pred_region
      %s19 = ssub.s32 64, 64
      %20 = vsyncadd [#allocation3], %s19
      %s22 = sshll.u32 [#allocation2], 4
      %s23 = int_to_ptr.vmem [resolvable:$true] %s22
      %25 = dma.hbm_to_vmem [thread:$0]  %s0, 64, %s23, [#allocation3]
    $region5: #{tpu_custom_call.1} parent=1 // pred_fallthru
      _
    // Predicated region
    $region6: #{tpu_custom_call.1} parent=1 // pred_check
      _
    $region7: #{tpu_custom_call.1} parent=1 // pred_check_branch
      %27 = sbr.rel (0) target = $region9
    $region8: #{tpu_custom_call.1} parent=1 // pred_region
      %s29 = ssub.s32 64, 64
      %30 = vsyncadd [#allocation6], %s29
      %s32 = sshll.u32 [#allocation5], 4
      %s33 = int_to_ptr.vmem [resolvable:$true] %s32
      %35 = dma.hbm_to_vmem [thread:$0]  %s1, 64, %s33, [#allocation6]
    $region9: #{tpu_custom_call.1} parent=1 // pred_fallthru
      _
    // Predicated region
    $region10: #{tpu_custom_call.1} parent=1 // pred_check
      _
    $region11: #{tpu_custom_call.1} parent=1 // pred_check_branch
      %37 = sbr.rel (0) target = $region13
    $region12: #{tpu_custom_call.1} parent=1 // pred_region
      %s39 = ssub.s32 512, 512
      %40 = vsyncadd [#allocation6], %s39
      %s41 = sshll.u32 [#allocation7], 4
      %s42 = int_to_ptr.vmem [resolvable:$true] %s41
      %47 = dma.hbm_to_vmem [thread:$0]  %s2, 512, %s42, [#allocation6], 64, 64, 4
    $region13: #{tpu_custom_call.1} parent=1 // pred_fallthru
      _
    // Predicated region
    $region14: #{tpu_custom_call.1} parent=1 // pred_check
      _
    $region15: #{tpu_custom_call.1} parent=1 // pred_check_branch
      %49 = sbr.rel (0) target = $region17
    $region16: #{tpu_custom_call.1} parent=1 // pred_region
      _
    $region17: #{tpu_custom_call.1} parent=1 // pred_fallthru
      _
    // Predicated region
    $region18: #{tpu_custom_call.1} parent=1 // pred_check
      _
    $region19: #{tpu_custom_call.1} parent=1 // pred_check_branch
      %51 = sbr.rel (0) target = $region21
    $region20: #{tpu_custom_call.1} parent=1 // pred_region
      %s53 = ssub.s32 2048, 2048
      %54 = vsyncadd [#allocation9], %s53
      %s55 = sshll.u32 [#allocation8], 4
      %s56 = int_to_ptr.vmem [resolvable:$true] %s55
      %61 = dma.hbm_to_vmem [thread:$0]  %s4, 2048, %s56, [#allocation9], 128, 128, 8
    $region21: #{tpu_custom_call.1} parent=1 // pred_fallthru
      _
    // Predicated region
    $region22: #{tpu_custom_call.1} parent=1 // pred_check
      _
    $region23: #{tpu_custom_call.1} parent=1 // pred_check_branch
      %63 = sbr.rel (0) target = $region25
    $region24: #{tpu_custom_call.1} parent=1 // pred_region
      %s65 = ssub.s32 1024, 1024
      %66 = vsyncadd [#allocation9], %s65
      %s67 = sshll.u32 [#allocation10], 4
      %s68 = int_to_ptr.vmem [resolvable:$true] %s67
      %73 = dma.hbm_to_vmem [thread:$0]  %s5, 1024, %s68, [#allocation9], 64, 64, 4
    $region25: #{tpu_custom_call.1} parent=1 // pred_fallthru
      _
    // Predicated region
    $region26: #{tpu_custom_call.1} parent=1 // pred_check
      _
    $region27: #{tpu_custom_call.1} parent=1 // pred_check_branch
      %75 = sbr.rel (0) target = $region29
    $region28: #{tpu_custom_call.1} parent=1 // pred_region
      _
    $region29: #{tpu_custom_call.1} parent=1 // pred_fallthru
      _
    // Predicated region
    $region30: #{tpu_custom_call.1} parent=1 // pred_check
      _
    $region31: #{tpu_custom_call.1} parent=1 // pred_check_branch
      %77 = sbr.rel (0) target = $region33
    $region32: #{tpu_custom_call.1} parent=1 // pred_region
      %78 = dma.done [#allocation3], 64
    $region33: #{tpu_custom_call.1} parent=1 // pred_fallthru
      _
    // Predicated region
    $region34: #{tpu_custom_call.1} parent=1 // pred_check
      _
    $region35: #{tpu_custom_call.1} parent=1 // pred_check_branch
      %80 = sbr.rel (0) target = $region37
    $region36: #{tpu_custom_call.1} parent=1 // pred_region
      %81 = dma.done [#allocation6], 64
    $region37: #{tpu_custom_call.1} parent=1 // pred_fallthru
      _
    // Predicated region
    $region38: #{tpu_custom_call.1} parent=1 // pred_check
      _
    $region39: #{tpu_custom_call.1} parent=1 // pred_check_branch
      %83 = sbr.rel (0) target = $region41
    $region40: #{tpu_custom_call.1} parent=1 // pred_region
      %84 = dma.done [#allocation6], 512
    $region41: #{tpu_custom_call.1} parent=1 // pred_fallthru
      _
    // Predicated region
    $region42: #{tpu_custom_call.1} parent=1 // pred_check
      _
    $region43: #{tpu_custom_call.1} parent=1 // pred_check_branch
      %86 = sbr.rel (0) target = $region45
    $region44: #{tpu_custom_call.1} parent=1 // pred_region
      %87 = dma.done [#allocation9], 2048
    $region45: #{tpu_custom_call.1} parent=1 // pred_fallthru
      _
    // Predicated region
    $region46: #{tpu_custom_call.1} parent=1 // pred_check
      _
    $region47: #{tpu_custom_call.1} parent=1 // pred_check_branch
      %89 = sbr.rel (0) target = $region49
    $region48: #{tpu_custom_call.1} parent=1 // pred_region
      %90 = dma.done [#allocation9], 1024
    $region49: #{tpu_custom_call.1} parent=1 // pred_fallthru
      _
    %v92 = vld [vmem:[#allocation2] sm:$0xf]
    %v93 = vld [vmem:[#allocation7] sm:$0xf]
    %v94 = vld [vmem:[#allocation7 + $0x4] sm:$0xf]
    %v95 = vld [vmem:[#allocation7 + $0x8] sm:$0xf]
    %v96 = vld [vmem:[#allocation7 + $0xc] sm:$0xf]
    %v97 = vld [vmem:[#allocation5] sm:$0xf]
    %s98 = scalar_lea.vmem [#allocation7], 16
    %v99 = vld [vmem:[%s98] sm:$0xf]
    %v100 = vld [vmem:[%s98 + $0x4] sm:$0xf]
    %v101 = vld [vmem:[%s98 + $0x8] sm:$0xf]
    %v102 = vld [vmem:[%s98 + $0xc] sm:$0xf]
    %v107 = vunpack.c.l.b16 %v99
    %v108 = vunpack.c.l.b16 %v100
    %v109 = vunpack.c.l.b16 %v101
    %v110 = vunpack.c.l.b16 %v102
    %v111 = vpack.c.b16 %v108, %v107
    %v112 = vpack.c.b16 %v110, %v109
    %vm115 = vcmask 261120
    %v117 = vsel %vm115, %v97, 0
    %119 = vmatprep.subr.bf16.mxu0 0
    %120 = vmatpush1.bf16.msra.mxu0 0
    %121 = vmatprep.subr.bf16.mxu0 0
    %122 = vmatpush1.bf16.msra.mxu0 0
    %123 = vmatprep.subr.bf16.mxu0 0
    %124 = vmatpush1.bf16.msra.mxu0 0
    %125 = vmatprep.subr.bf16.mxu0 0
    %126 = vmatpush1.bf16.msra.mxu0 0
    %127 = vmatprep.subr.bf16.mxu0 0
    %128 = vmatpush1.bf16.msra.mxu0 0
    %129 = vmatprep.subr.bf16.mxu0 0
    %130 = vmatpush1.bf16.msra.mxu0 0
    %131 = vmatprep.subr.bf16.mxu0 0
    %132 = vmatpush1.bf16.msra.mxu0 %v112
    %133 = vmatprep.subr.bf16.mxu0 0
    %134 = vmatpush1.bf16.msra.mxu0 %v111
    %135 = vmatprep.subr.bf16.mxu0 0
    %136 = vmatpush2.bf16.msra.mxu0 0
    %137 = vmatprep.subr.bf16.mxu0 0
    %138 = vmatpush2.bf16.msra.mxu0 0
    %139 = vmatprep.subr.bf16.mxu0 0
    %140 = vmatpush2.bf16.msra.mxu0 0
    %141 = vmatprep.subr.bf16.mxu0 0
    %142 = vmatpush2.bf16.msra.mxu0 0
    %143 = vmatprep.subr.bf16.mxu0 0
    %144 = vmatpush2.bf16.msra.mxu0 0
    %145 = vmatprep.subr.bf16.mxu0 0
    %146 = vmatpush2.bf16.msra.mxu0 0
    %147 = vmatprep.subr.bf16.mxu0 0
    %148 = vmatpush2.bf16.msra.mxu0 0
    %149 = vmatprep.subr.bf16.mxu0 0
    %150 = vmatpush2.bf16.msra.mxu0 0
    %151 = vmatprep.mubr.bf16.mxu0 0
    %152 = vmatmul.mubr.bf16.gmra.mxu0 %v117
    %v153 = vpop.f32.mrf.mxu0
    %v154 = vadd.f32 0.0, %v153
    %v155 = vpop.f32.mrf.mxu0
    %v156 = vpop.f32.mrf.mxu0
    %v157 = vpop.f32.mrf.mxu0
    %158 = vdwg.mxu0
    %v163 = vunpack.c.l.b16 %v93
    %v164 = vunpack.c.l.b16 %v94
    %v165 = vunpack.c.l.b16 %v95
    %v166 = vunpack.c.l.b16 %v96
    %v167 = vpack.c.b16 %v164, %v163
    %v168 = vpack.c.b16 %v166, %v165
    %v172 = vsel %vm115, %v92, 0
    %174 = vmatprep.subr.bf16.mxu0 0
    %175 = vmatpush1.bf16.msra.mxu0 0
    %176 = vmatprep.subr.bf16.mxu0 0
    %177 = vmatpush1.bf16.msra.mxu0 0
    %178 = vmatprep.subr.bf16.mxu0 0
    %179 = vmatpush1.bf16.msra.mxu0 0
    %180 = vmatprep.subr.bf16.mxu0 0
    %181 = vmatpush1.bf16.msra.mxu0 0
    %182 = vmatprep.subr.bf16.mxu0 0
    %183 = vmatpush1.bf16.msra.mxu0 0
    %184 = vmatprep.subr.bf16.mxu0 0
    %185 = vmatpush1.bf16.msra.mxu0 0
    %186 = vmatprep.subr.bf16.mxu0 0
    %187 = vmatpush1.bf16.msra.mxu0 %v168
    %188 = vmatprep.subr.bf16.mxu0 0
    %189 = vmatpush1.bf16.msra.mxu0 %v167
    %190 = vmatprep.subr.bf16.mxu0 0
    %191 = vmatpush2.bf16.msra.mxu0 0
    %192 = vmatprep.subr.bf16.mxu0 0
    %193 = vmatpush2.bf16.msra.mxu0 0
    %194 = vmatprep.subr.bf16.mxu0 0
    %195 = vmatpush2.bf16.msra.mxu0 0
    %196 = vmatprep.subr.bf16.mxu0 0
    %197 = vmatpush2.bf16.msra.mxu0 0
    %198 = vmatprep.subr.bf16.mxu0 0
    %199 = vmatpush2.bf16.msra.mxu0 0
    %200 = vmatprep.subr.bf16.mxu0 0
    %201 = vmatpush2.bf16.msra.mxu0 0
    %202 = vmatprep.subr.bf16.mxu0 0
    %203 = vmatpush2.bf16.msra.mxu0 0
    %204 = vmatprep.subr.bf16.mxu0 0
    %205 = vmatpush2.bf16.msra.mxu0 0
    %206 = vmatprep.mubr.bf16.mxu0 0
    %207 = vmatmul.mubr.bf16.gmra.mxu0 %v172
    %v208 = vpop.f32.mrf.mxu0
    %v209 = vadd.f32 %v154, %v208
    %v210 = vpop.f32.mrf.mxu0
    %v211 = vpop.f32.mrf.mxu0
    %v212 = vpop.f32.mrf.mxu0
    %213 = vdwg.mxu0
    %v214 = vld [vmem:[%s3] sm:$0x1]
    %v215 = vlaneseq
    %v216 = vshrl.u32 %v215, 7
    %v217 = vsub.s32 0, %v216
    %v218 = vrot.slane %v214, %v217
    %v219 = vadd.f32 %v209, %v218
    %v220 = vmul.f32 %v219, %v219
    %v221 = vld [vmem:[#allocation8] sm:$0xff]
    %v222 = vld [vmem:[#allocation8 + $0x8] sm:$0xff]
    %v223 = vld [vmem:[#allocation8 + $0x10] sm:$0xff]
    %v224 = vld [vmem:[#allocation8 + $0x18] sm:$0xff]
    %v225 = vld [vmem:[#allocation8 + $0x20] sm:$0xff]
    %v226 = vld [vmem:[#allocation8 + $0x28] sm:$0xff]
    %v227 = vld [vmem:[#allocation8 + $0x30] sm:$0xff]
    %v228 = vld [vmem:[#allocation8 + $0x38] sm:$0xff]
    %v229 = vld [vmem:[#allocation8 + $0x40] sm:$0xff]
    %v230 = vld [vmem:[#allocation8 + $0x48] sm:$0xff]
    %v231 = vld [vmem:[#allocation8 + $0x50] sm:$0xff]
    %v232 = vld [vmem:[#allocation8 + $0x58] sm:$0xff]
    %v233 = vld [vmem:[#allocation8 + $0x60] sm:$0xff]
    %v234 = vld [vmem:[#allocation8 + $0x68] sm:$0xff]
    %v235 = vld [vmem:[#allocation8 + $0x70] sm:$0xff]
    %v236 = vld [vmem:[#allocation8 + $0x78] sm:$0xff]
    %237 = vmatprep.subr.mxu0 0.0
    %238 = vmatpush1.msra.mxu0 %v236
    %239 = vmatprep.subr.mxu0 0.0
    %240 = vmatpush1.msra.mxu0 %v235
    %241 = vmatprep.subr.mxu0 0.0
    %242 = vmatpush1.msra.mxu0 %v234
    %243 = vmatprep.subr.mxu0 0.0
    %244 = vmatpush1.msra.mxu0 %v233
    %245 = vmatprep.subr.mxu0 0.0
    %246 = vmatpush1.msra.mxu0 %v232
    %247 = vmatprep.subr.mxu0 0.0
    %248 = vmatpush1.msra.mxu0 %v231
    %249 = vmatprep.subr.mxu0 0.0
    %250 = vmatpush1.msra.mxu0 %v230
    %251 = vmatprep.subr.mxu0 0.0
    %252 = vmatpush1.msra.mxu0 %v229
    %253 = vmatprep.subr.mxu0 0.0
    %254 = vmatpush1.msra.mxu0 %v228
    %255 = vmatprep.subr.mxu0 0.0
    %256 = vmatpush1.msra.mxu0 %v227
    %257 = vmatprep.subr.mxu0 0.0
    %258 = vmatpush1.msra.mxu0 %v226
    %259 = vmatprep.subr.mxu0 0.0
    %260 = vmatpush1.msra.mxu0 %v225
    %261 = vmatprep.subr.mxu0 0.0
    %262 = vmatpush1.msra.mxu0 %v224
    %263 = vmatprep.subr.mxu0 0.0
    %264 = vmatpush1.msra.mxu0 %v223
    %265 = vmatprep.subr.mxu0 0.0
    %266 = vmatpush1.msra.mxu0 %v222
    %267 = vmatprep.subr.mxu0 0.0
    %268 = vmatpush1.msra.mxu0 %v221
    %269 = vmatprep.subr.mxu0 0.0
    %270 = vmatpush2.msra.mxu0 0.0
    %271 = vmatprep.subr.mxu0 0.0
    %272 = vmatpush2.msra.mxu0 0.0
    %273 = vmatprep.subr.mxu0 0.0
    %274 = vmatpush2.msra.mxu0 0.0
    %275 = vmatprep.subr.mxu0 0.0
    %276 = vmatpush2.msra.mxu0 0.0
    %277 = vmatprep.subr.mxu0 0.0
    %278 = vmatpush2.msra.mxu0 0.0
    %279 = vmatprep.subr.mxu0 0.0
    %280 = vmatpush2.msra.mxu0 0.0
    %281 = vmatprep.subr.mxu0 0.0
    %282 = vmatpush2.msra.mxu0 0.0
    %283 = vmatprep.subr.mxu0 0.0
    %284 = vmatpush2.msra.mxu0 0.0
    %285 = vmatprep.subr.mxu0 0.0
    %286 = vmatpush2.msra.mxu0 0.0
    %287 = vmatprep.subr.mxu0 0.0
    %288 = vmatpush2.msra.mxu0 0.0
    %289 = vmatprep.subr.mxu0 0.0
    %290 = vmatpush2.msra.mxu0 0.0
    %291 = vmatprep.subr.mxu0 0.0
    %292 = vmatpush2.msra.mxu0 0.0
    %293 = vmatprep.subr.mxu0 0.0
    %294 = vmatpush2.msra.mxu0 0.0
    %295 = vmatprep.subr.mxu0 0.0
    %296 = vmatpush2.msra.mxu0 0.0
    %297 = vmatprep.subr.mxu0 0.0
    %298 = vmatpush2.msra.mxu0 0.0
    %299 = vmatprep.subr.mxu0 0.0
    %300 = vmatpush2.msra.mxu0 0.0
    %301 = vmatprep.mubr.f32.mxu0 0.0
    %302 = vmatmul.mubr.f32.gmra.mxu0 %v219
    %v303 = vpop.f32.mrf.mxu0
    %v304 = vadd.f32 0.0, %v303
    %v305 = vpop.f32.mrf.mxu0
    %306 = vmatprep.mubr.f32.mxu0 0.0
    %307 = vmatmul.mubr.f32.gmra.mxu0 %v220
    %v308 = vpop.f32.mrf.mxu0
    %v309 = vadd.f32 0.0, %v308
    %v310 = vpop.f32.mrf.mxu0
    %311 = vdwg.mxu0
    %v312 = vmul.f32 %v304, %v304
    %v313 = vsub.f32 %v309, %v312
    %v314 = vsub.f32 %v219, %v304
    %v315 = vadd.f32 %v313, 1e-05
    %v316 = vrsqrt.pop %v315
    %v317 = vmul.f32 %v314, %v316
    %v318 = vld [vmem:[%s3 + $0x1] sm:$0x1]
    %v319 = vlaneseq
    %v320 = vshrl.u32 %v319, 7
    %v321 = vsub.s32 0, %v320
    %v322 = vrot.slane %v318, %v321
    %v323 = vmul.f32 %v317, %v322
    %v324 = vld [vmem:[%s3 + $0x2] sm:$0x1]
    %v325 = vlaneseq
    %v326 = vshrl.u32 %v325, 7
    %v327 = vsub.s32 0, %v326
    %v328 = vrot.slane %v324, %v327
    %v329 = vadd.f32 %v323, %v328
    %v330 = vxor.u32 %v329, 2147483648
    %v331 = vmul.f32 %v330, 1.442695
    %v332 = vpow.pop %v331
    %v333 = vadd.f32 %v332, 1.0
    %v334 = vrcp.pop %v333
    %v335 = vmul.f32 1.0, %v334
    %v336 = vmul.f32 %v329, %v335
    %v337 = vpack.c.bf16 %v336, %v336
    %v338 = vld [vmem:[#allocation10] sm:$0xf]
    %v339 = vld [vmem:[#allocation10 + $0x4] sm:$0xf]
    %v340 = vld [vmem:[#allocation10 + $0x8] sm:$0xf]
    %v341 = vld [vmem:[#allocation10 + $0xc] sm:$0xf]
    %v342 = vld [vmem:[#allocation10 + $0x10] sm:$0xf]
    %v343 = vld [vmem:[#allocation10 + $0x14] sm:$0xf]
    %v344 = vld [vmem:[#allocation10 + $0x18] sm:$0xf]
    %v345 = vld [vmem:[#allocation10 + $0x1c] sm:$0xf]
    %v346 = vld [vmem:[#allocation10 + $0x20] sm:$0xf]
    %v347 = vld [vmem:[#allocation10 + $0x24] sm:$0xf]
    %v348 = vld [vmem:[#allocation10 + $0x28] sm:$0xf]
    %v349 = vld [vmem:[#allocation10 + $0x2c] sm:$0xf]
    %v350 = vld [vmem:[#allocation10 + $0x30] sm:$0xf]
    %v351 = vld [vmem:[#allocation10 + $0x34] sm:$0xf]
    %v352 = vld [vmem:[#allocation10 + $0x38] sm:$0xf]
    %v353 = vld [vmem:[#allocation10 + $0x3c] sm:$0xf]
    %v354 = vld [vmem:[%s6] sm:$0x1]
    %v356 = vlaneseq
    %v357 = vshrl.u32 %v356, 7
    %v358 = vsub.s32 0, %v357
    %v359 = vrot.slane %v354, %v358
    %v377 = vunpack.c.l.b16 %v338
    %v378 = vunpack.c.l.b16 %v339
    %v379 = vunpack.c.l.b16 %v340
    %v380 = vunpack.c.l.b16 %v341
    %v381 = vunpack.c.l.b16 %v342
    %v382 = vunpack.c.l.b16 %v343
    %v383 = vunpack.c.l.b16 %v344
    %v384 = vunpack.c.l.b16 %v345
    %v385 = vunpack.c.l.b16 %v346
    %v386 = vunpack.c.l.b16 %v347
    %v387 = vunpack.c.l.b16 %v348
    %v388 = vunpack.c.l.b16 %v349
    %v389 = vunpack.c.l.b16 %v350
    %v390 = vunpack.c.l.b16 %v351
    %v391 = vunpack.c.l.b16 %v352
    %v392 = vunpack.c.l.b16 %v353
    %v393 = vpack.c.b16 %v378, %v377
    %v394 = vpack.c.b16 %v380, %v379
    %v395 = vpack.c.b16 %v382, %v381
    %v396 = vpack.c.b16 %v384, %v383
    %v397 = vpack.c.b16 %v386, %v385
    %v398 = vpack.c.b16 %v388, %v387
    %v399 = vpack.c.b16 %v390, %v389
    %v400 = vpack.c.b16 %v392, %v391
    %409 = vmatprep.subr.bf16.mxu0 0
    %410 = vmatpush1.bf16.msra.mxu0 %v400
    %411 = vmatprep.subr.bf16.mxu0 0
    %412 = vmatpush1.bf16.msra.mxu0 %v399
    %413 = vmatprep.subr.bf16.mxu0 0
    %414 = vmatpush1.bf16.msra.mxu0 %v398
    %415 = vmatprep.subr.bf16.mxu0 0
    %416 = vmatpush1.bf16.msra.mxu0 %v397
    %417 = vmatprep.subr.bf16.mxu0 0
    %418 = vmatpush1.bf16.msra.mxu0 %v396
    %419 = vmatprep.subr.bf16.mxu0 0
    %420 = vmatpush1.bf16.msra.mxu0 %v395
    %421 = vmatprep.subr.bf16.mxu0 0
    %422 = vmatpush1.bf16.msra.mxu0 %v394
    %423 = vmatprep.subr.bf16.mxu0 0
    %424 = vmatpush1.bf16.msra.mxu0 %v393
    %425 = vmatprep.subr.bf16.mxu0 0
    %426 = vmatpush2.bf16.msra.mxu0 0
    %427 = vmatprep.subr.bf16.mxu0 0
    %428 = vmatpush2.bf16.msra.mxu0 0
    %429 = vmatprep.subr.bf16.mxu0 0
    %430 = vmatpush2.bf16.msra.mxu0 0
    %431 = vmatprep.subr.bf16.mxu0 0
    %432 = vmatpush2.bf16.msra.mxu0 0
    %433 = vmatprep.subr.bf16.mxu0 0
    %434 = vmatpush2.bf16.msra.mxu0 0
    %435 = vmatprep.subr.bf16.mxu0 0
    %436 = vmatpush2.bf16.msra.mxu0 0
    %437 = vmatprep.subr.bf16.mxu0 0
    %438 = vmatpush2.bf16.msra.mxu0 0
    %439 = vmatprep.subr.bf16.mxu0 0
    %440 = vmatpush2.bf16.msra.mxu0 0
    %441 = vmatprep.mubr.bf16.mxu0 0
    %442 = vmatmul.mubr.bf16.gmra.mxu0 %v337
    %v443 = vpop.f32.mrf.mxu0
    %v444 = vadd.f32 %v359, %v443
    %v445 = vpop.f32.mrf.mxu0
    %v446 = vpop.f32.mrf.mxu0
    %v447 = vpop.f32.mrf.mxu0
    %448 = vdwg.mxu0
    %449 = vst [vmem:[#allocation11] sm:$0xff] %v444
    // Predicated region
    $region50: #{tpu_custom_call.1} parent=1 // pred_check
      _
    $region51: #{tpu_custom_call.1} parent=1 // pred_check_branch
      %451 = sbr.rel (0) target = $region53
    $region52: #{tpu_custom_call.1} parent=1 // pred_region
      %s453 = ssub.s32 128, 128
      %454 = vsyncadd [#allocation4], %s453
      %s456 = sshll.u32 [#allocation11], 4
      %s457 = int_to_ptr.vmem [resolvable:$true] %s456
      %459 = dma.vmem_to_hbm [thread:$0]  %s457, 128, %s7, [#allocation4]
    $region53: #{tpu_custom_call.1} parent=1 // pred_fallthru
      _
    // Predicated region
    $region54: #{tpu_custom_call.1} parent=1 // pred_check
      _
    $region55: #{tpu_custom_call.1} parent=1 // pred_check_branch
      %461 = sbr.rel (0) target = $region57
    $region56: #{tpu_custom_call.1} parent=1 // pred_region
      %462 = dma.done [#allocation4], 128
    $region57: #{tpu_custom_call.1} parent=1 // pred_fallthru
      _
    %463 = vsyncpa [#allocation3], 1
    %464 = vsyncpa [#allocation6], 1
    %465 = vsyncpa [#allocation9], 1
    %466 = vsyncpa [#allocation4], 1

// kernel: tpu_custom_call.1
$region0: #{tpu_custom_call.1}
  #allocation0 [shape = 'u32[]', space=smem, size = 0x4, offset = 0x4, fixed_abs, tag = 'smem constant byte address 0x4 - core index']
  #allocation1 [shape = 'u32[144,128]{1,0:T(1,128)}', space=vmem, size = 0x12000, scoped, tag = 'internal scratch']
  %s0 = inlined_call_operand.hbm [shape: bf16[8,32], index: 0, kind: input, shape index: {}]
  %s1 = inlined_call_operand.hbm [shape: bf16[8,32], index: 1, kind: input, shape index: {}]
  %s2 = inlined_call_operand.hbm [shape: bf16[2,32,128], index: 2, kind: input, shape index: {}]
  %s3 = inlined_call_operand.vmem [shape: f32[3,128], index: 3, kind: input, shape index: {}]
  %s4 = inlined_call_operand.hbm [shape: f32[128,128], index: 4, kind: input, shape index: {}]
  %s5 = inlined_call_operand.hbm [shape: bf16[128,128], index: 5, kind: input, shape index: {}]
  %s6 = inlined_call_operand.vmem [shape: f32[1,128], index: 6, kind: input, shape index: {}]
  %s7 = inlined_call_operand.hbm [shape: f32[8,128], index: 7, kind: output, shape index: {}]
  %s8 = sld [smem:[#allocation0]]
  $region58: #{tpu_custom_call.1} parent=0
    _
  %s10 = ssub.s32 1, %s8
  %s11 = scalar_select 0, %s10, %s8
  $region1: #{tpu_custom_call.1} parent=0
    #allocation2 [shape = 'u8[2048]{0}', space=vmem, size = 0x800, scoped, tag = 'input window, operand 0, single buffered']
    #allocation3 [shape = 's32[1]{0}', space=sflag, size = 0x4, scoped, tag = 'scoped memory for tpu_custom_call.1']
    #allocation4 [shape = 's32[1]{0}', space=sflag, size = 0x4, scoped, tag = 'scoped memory for tpu_custom_call.1']
    #allocation5 [shape = 'u8[2048]{0}', space=vmem, size = 0x800, scoped, tag = 'input window, operand 1, single buffered']
    #allocation6 [shape = 's32[1]{0}', space=sflag, size = 0x4, scoped, tag = 'scoped memory for tpu_custom_call.1']
    #allocation7 [shape = 'u8[16384]{0}', space=vmem, size = 0x4000, scoped, tag = 'input window, operand 2, single buffered']
    #allocation8 [shape = 'u8[65536]{0}', space=vmem, size = 0x10000, scoped, tag = 'input window, operand 4, single buffered']
    #allocation9 [shape = 's32[1]{0}', space=sflag, size = 0x4, scoped, tag = 'scoped memory for tpu_custom_call.1']
    #allocation10 [shape = 'u8[32768]{0}', space=vmem, size = 0x8000, scoped, tag = 'input window, operand 5, single buffered']
    #allocation11 [shape = 'u8[4096]{0}', space=vmem, size = 0x1000, scoped, tag = 'output window, operand 0, single buffered']
    %12 = vsyncpa [#allocation3], 0
    %13 = vsyncpa [#allocation6], 0
    %14 = vsyncpa [#allocation9], 0
    %15 = vsyncpa [#allocation4], 0
    // Predicated region
    $region2: #{tpu_custom_call.1} parent=1 // pred_check
      _
    $region3: #{tpu_custom_call.1} parent=1 // pred_check_branch
      %17 = sbr.rel (0) target = $region5
    $region4: #{tpu_custom_call.1} parent=1 // pred_region
      %s19 = ssub.s32 64, 64
      %20 = vsyncadd [#allocation3], %s19
      %s22 = sshll.u32 [#allocation2], 4
      %s23 = int_to_ptr.vmem [resolvable:$true] %s22
      %25 = dma.hbm_to_vmem [thread:$0]  %s0, 64, %s23, [#allocation3]
    $region5: #{tpu_custom_call.1} parent=1 // pred_fallthru
      _
    // Predicated region
    $region6: #{tpu_custom_call.1} parent=1 // pred_check
      _
    $region7: #{tpu_custom_call.1} parent=1 // pred_check_branch
      %27 = sbr.rel (0) target = $region9
    $region8: #{tpu_custom_call.1} parent=1 // pred_region
      %s29 = ssub.s32 64, 64
      %30 = vsyncadd [#allocation6], %s29
      %s32 = sshll.u32 [#allocation5], 4
      %s33 = int_to_ptr.vmem [resolvable:$true] %s32
      %35 = dma.hbm_to_vmem [thread:$0]  %s1, 64, %s33, [#allocation6]
    $region9: #{tpu_custom_call.1} parent=1 // pred_fallthru
      _
    // Predicated region
    $region10: #{tpu_custom_call.1} parent=1 // pred_check
      _
    $region11: #{tpu_custom_call.1} parent=1 // pred_check_branch
      %37 = sbr.rel (0) target = $region13
    $region12: #{tpu_custom_call.1} parent=1 // pred_region
      %s39 = ssub.s32 512, 512
      %40 = vsyncadd [#allocation6], %s39
      %s41 = sshll.u32 [#allocation7], 4
      %s42 = int_to_ptr.vmem [resolvable:$true] %s41
      %47 = dma.hbm_to_vmem [thread:$0]  %s2, 512, %s42, [#allocation6], 64, 64, 4
    $region13: #{tpu_custom_call.1} parent=1 // pred_fallthru
      _
    // Predicated region
    $region14: #{tpu_custom_call.1} parent=1 // pred_check
      _
    $region15: #{tpu_custom_call.1} parent=1 // pred_check_branch
      %49 = sbr.rel (0) target = $region17
    $region16: #{tpu_custom_call.1} parent=1 // pred_region
      _
    $region17: #{tpu_custom_call.1} parent=1 // pred_fallthru
      _
    // Predicated region
    $region18: #{tpu_custom_call.1} parent=1 // pred_check
      _
    $region19: #{tpu_custom_call.1} parent=1 // pred_check_branch
      %51 = sbr.rel (0) target = $region21
    $region20: #{tpu_custom_call.1} parent=1 // pred_region
      %s53 = ssub.s32 2048, 2048
      %54 = vsyncadd [#allocation9], %s53
      %s55 = sshll.u32 [#allocation8], 4
      %s56 = int_to_ptr.vmem [resolvable:$true] %s55
      %61 = dma.hbm_to_vmem [thread:$0]  %s4, 2048, %s56, [#allocation9], 128, 128, 8
    $region21: #{tpu_custom_call.1} parent=1 // pred_fallthru
      _
    // Predicated region
    $region22: #{tpu_custom_call.1} parent=1 // pred_check
      _
    $region23: #{tpu_custom_call.1} parent=1 // pred_check_branch
      %63 = sbr.rel (0) target = $region25
    $region24: #{tpu_custom_call.1} parent=1 // pred_region
      %s65 = ssub.s32 1024, 1024
      %66 = vsyncadd [#allocation9], %s65
      %s67 = sshll.u32 [#allocation10], 4
      %s68 = int_to_ptr.vmem [resolvable:$true] %s67
      %73 = dma.hbm_to_vmem [thread:$0]  %s5, 1024, %s68, [#allocation9], 64, 64, 4
    $region25: #{tpu_custom_call.1} parent=1 // pred_fallthru
      _
    // Predicated region
    $region26: #{tpu_custom_call.1} parent=1 // pred_check
      _
    $region27: #{tpu_custom_call.1} parent=1 // pred_check_branch
      %75 = sbr.rel (0) target = $region29
    $region28: #{tpu_custom_call.1} parent=1 // pred_region
      _
    $region29: #{tpu_custom_call.1} parent=1 // pred_fallthru
      _
    // Predicated region
    $region30: #{tpu_custom_call.1} parent=1 // pred_check
      _
    $region31: #{tpu_custom_call.1} parent=1 // pred_check_branch
      %77 = sbr.rel (0) target = $region33
    $region32: #{tpu_custom_call.1} parent=1 // pred_region
      %78 = dma.done [#allocation3], 64
    $region33: #{tpu_custom_call.1} parent=1 // pred_fallthru
      _
    // Predicated region
    $region34: #{tpu_custom_call.1} parent=1 // pred_check
      _
    $region35: #{tpu_custom_call.1} parent=1 // pred_check_branch
      %80 = sbr.rel (0) target = $region37
    $region36: #{tpu_custom_call.1} parent=1 // pred_region
      %81 = dma.done [#allocation6], 64
    $region37: #{tpu_custom_call.1} parent=1 // pred_fallthru
      _
    // Predicated region
    $region38: #{tpu_custom_call.1} parent=1 // pred_check
      _
    $region39: #{tpu_custom_call.1} parent=1 // pred_check_branch
      %83 = sbr.rel (0) target = $region41
    $region40: #{tpu_custom_call.1} parent=1 // pred_region
      %84 = dma.done [#allocation6], 512
    $region41: #{tpu_custom_call.1} parent=1 // pred_fallthru
      _
    // Predicated region
    $region42: #{tpu_custom_call.1} parent=1 // pred_check
      _
    $region43: #{tpu_custom_call.1} parent=1 // pred_check_branch
      %86 = sbr.rel (0) target = $region45
    $region44: #{tpu_custom_call.1} parent=1 // pred_region
      %87 = dma.done [#allocation9], 2048
    $region45: #{tpu_custom_call.1} parent=1 // pred_fallthru
      _
    // Predicated region
    $region46: #{tpu_custom_call.1} parent=1 // pred_check
      _
    $region47: #{tpu_custom_call.1} parent=1 // pred_check_branch
      %89 = sbr.rel (0) target = $region49
    $region48: #{tpu_custom_call.1} parent=1 // pred_region
      %90 = dma.done [#allocation9], 1024
    $region49: #{tpu_custom_call.1} parent=1 // pred_fallthru
      _
    %v92 = vld [vmem:[#allocation2] sm:$0xf]
    %v93 = vld [vmem:[#allocation7] sm:$0xf]
    %v94 = vld [vmem:[#allocation7 + $0x4] sm:$0xf]
    %v95 = vld [vmem:[#allocation7 + $0x8] sm:$0xf]
    %v96 = vld [vmem:[#allocation7 + $0xc] sm:$0xf]
    %v97 = vld [vmem:[#allocation5] sm:$0xf]
    %s98 = scalar_lea.vmem [#allocation7], 16
    %v99 = vld [vmem:[%s98] sm:$0xf]
    %v100 = vld [vmem:[%s98 + $0x4] sm:$0xf]
    %v101 = vld [vmem:[%s98 + $0x8] sm:$0xf]
    %v102 = vld [vmem:[%s98 + $0xc] sm:$0xf]
    %v107 = vunpack.c.l.b16 %v99
    %v108 = vunpack.c.l.b16 %v100
    %v109 = vunpack.c.l.b16 %v101
    %v110 = vunpack.c.l.b16 %v102
    %v111 = vpack.c.b16 %v108, %v107
    %v112 = vpack.c.b16 %v110, %v109
    %vm115 = vcmask 261120
    %v117 = vsel %vm115, %v97, 0
    %119 = vmatprep.subr.bf16.mxu0 0
    %120 = vmatpush1.bf16.msra.mxu0 0
    %121 = vmatprep.subr.bf16.mxu0 0
    %122 = vmatpush1.bf16.msra.mxu0 0
    %123 = vmatprep.subr.bf16.mxu0 0
    %124 = vmatpush1.bf16.msra.mxu0 0
    %125 = vmatprep.subr.bf16.mxu0 0
    %126 = vmatpush1.bf16.msra.mxu0 0
    %127 = vmatprep.subr.bf16.mxu0 0
    %128 = vmatpush1.bf16.msra.mxu0 0
    %129 = vmatprep.subr.bf16.mxu0 0
    %130 = vmatpush1.bf16.msra.mxu0 0
    %131 = vmatprep.subr.bf16.mxu0 0
    %132 = vmatpush1.bf16.msra.mxu0 %v112
    %133 = vmatprep.subr.bf16.mxu0 0
    %134 = vmatpush1.bf16.msra.mxu0 %v111
    %135 = vmatprep.subr.bf16.mxu0 0
    %136 = vmatpush2.bf16.msra.mxu0 0
    %137 = vmatprep.subr.bf16.mxu0 0
    %138 = vmatpush2.bf16.msra.mxu0 0
    %139 = vmatprep.subr.bf16.mxu0 0
    %140 = vmatpush2.bf16.msra.mxu0 0
    %141 = vmatprep.subr.bf16.mxu0 0
    %142 = vmatpush2.bf16.msra.mxu0 0
    %143 = vmatprep.subr.bf16.mxu0 0
    %144 = vmatpush2.bf16.msra.mxu0 0
    %145 = vmatprep.subr.bf16.mxu0 0
    %146 = vmatpush2.bf16.msra.mxu0 0
    %147 = vmatprep.subr.bf16.mxu0 0
    %148 = vmatpush2.bf16.msra.mxu0 0
    %149 = vmatprep.subr.bf16.mxu0 0
    %150 = vmatpush2.bf16.msra.mxu0 0
    %151 = vmatprep.mubr.bf16.mxu0 0
    %152 = vmatmul.mubr.bf16.gmra.mxu0 %v117
    %v153 = vpop.f32.mrf.mxu0
    %v154 = vadd.f32 0.0, %v153
    %v155 = vpop.f32.mrf.mxu0
    %v156 = vpop.f32.mrf.mxu0
    %v157 = vpop.f32.mrf.mxu0
    %158 = vdwg.mxu0
    %v163 = vunpack.c.l.b16 %v93
    %v164 = vunpack.c.l.b16 %v94
    %v165 = vunpack.c.l.b16 %v95
    %v166 = vunpack.c.l.b16 %v96
    %v167 = vpack.c.b16 %v164, %v163
    %v168 = vpack.c.b16 %v166, %v165
    %v172 = vsel %vm115, %v92, 0
    %174 = vmatprep.subr.bf16.mxu0 0
    %175 = vmatpush1.bf16.msra.mxu0 0
    %176 = vmatprep.subr.bf16.mxu0 0
    %177 = vmatpush1.bf16.msra.mxu0 0
    %178 = vmatprep.subr.bf16.mxu0 0
    %179 = vmatpush1.bf16.msra.mxu0 0
    %180 = vmatprep.subr.bf16.mxu0 0
    %181 = vmatpush1.bf16.msra.mxu0 0
    %182 = vmatprep.subr.bf16.mxu0 0
    %183 = vmatpush1.bf16.msra.mxu0 0
    %184 = vmatprep.subr.bf16.mxu0 0
    %185 = vmatpush1.bf16.msra.mxu0 0
    %186 = vmatprep.subr.bf16.mxu0 0
    %187 = vmatpush1.bf16.msra.mxu0 %v168
    %188 = vmatprep.subr.bf16.mxu0 0
    %189 = vmatpush1.bf16.msra.mxu0 %v167
    %190 = vmatprep.subr.bf16.mxu0 0
    %191 = vmatpush2.bf16.msra.mxu0 0
    %192 = vmatprep.subr.bf16.mxu0 0
    %193 = vmatpush2.bf16.msra.mxu0 0
    %194 = vmatprep.subr.bf16.mxu0 0
    %195 = vmatpush2.bf16.msra.mxu0 0
    %196 = vmatprep.subr.bf16.mxu0 0
    %197 = vmatpush2.bf16.msra.mxu0 0
    %198 = vmatprep.subr.bf16.mxu0 0
    %199 = vmatpush2.bf16.msra.mxu0 0
    %200 = vmatprep.subr.bf16.mxu0 0
    %201 = vmatpush2.bf16.msra.mxu0 0
    %202 = vmatprep.subr.bf16.mxu0 0
    %203 = vmatpush2.bf16.msra.mxu0 0
    %204 = vmatprep.subr.bf16.mxu0 0
    %205 = vmatpush2.bf16.msra.mxu0 0
    %206 = vmatprep.mubr.bf16.mxu0 0
    %207 = vmatmul.mubr.bf16.gmra.mxu0 %v172
    %v208 = vpop.f32.mrf.mxu0
    %v209 = vadd.f32 %v154, %v208
    %v210 = vpop.f32.mrf.mxu0
    %v211 = vpop.f32.mrf.mxu0
    %v212 = vpop.f32.mrf.mxu0
    %213 = vdwg.mxu0
    %v214 = vld [vmem:[%s3] sm:$0x1]
    %v215 = vlaneseq
    %v216 = vshrl.u32 %v215, 7
    %v217 = vsub.s32 0, %v216
    %v218 = vrot.slane %v214, %v217
    %v219 = vadd.f32 %v209, %v218
    %v220 = vmul.f32 %v219, %v219
    %v221 = vld [vmem:[#allocation8] sm:$0xff]
    %v222 = vld [vmem:[#allocation8 + $0x8] sm:$0xff]
    %v223 = vld [vmem:[#allocation8 + $0x10] sm:$0xff]
    %v224 = vld [vmem:[#allocation8 + $0x18] sm:$0xff]
    %v225 = vld [vmem:[#allocation8 + $0x20] sm:$0xff]
    %v226 = vld [vmem:[#allocation8 + $0x28] sm:$0xff]
    %v227 = vld [vmem:[#allocation8 + $0x30] sm:$0xff]
    %v228 = vld [vmem:[#allocation8 + $0x38] sm:$0xff]
    %v229 = vld [vmem:[#allocation8 + $0x40] sm:$0xff]
    %v230 = vld [vmem:[#allocation8 + $0x48] sm:$0xff]
    %v231 = vld [vmem:[#allocation8 + $0x50] sm:$0xff]
    %v232 = vld [vmem:[#allocation8 + $0x58] sm:$0xff]
    %v233 = vld [vmem:[#allocation8 + $0x60] sm:$0xff]
    %v234 = vld [vmem:[#allocation8 + $0x68] sm:$0xff]
    %v235 = vld [vmem:[#allocation8 + $0x70] sm:$0xff]
    %v236 = vld [vmem:[#allocation8 + $0x78] sm:$0xff]
    %237 = vmatprep.subr.mxu0 0.0
    %238 = vmatpush1.msra.mxu0 %v236
    %239 = vmatprep.subr.mxu0 0.0
    %240 = vmatpush1.msra.mxu0 %v235
    %241 = vmatprep.subr.mxu0 0.0
    %242 = vmatpush1.msra.mxu0 %v234
    %243 = vmatprep.subr.mxu0 0.0
    %244 = vmatpush1.msra.mxu0 %v233
    %245 = vmatprep.subr.mxu0 0.0
    %246 = vmatpush1.msra.mxu0 %v232
    %247 = vmatprep.subr.mxu0 0.0
    %248 = vmatpush1.msra.mxu0 %v231
    %249 = vmatprep.subr.mxu0 0.0
    %250 = vmatpush1.msra.mxu0 %v230
    %251 = vmatprep.subr.mxu0 0.0
    %252 = vmatpush1.msra.mxu0 %v229
    %253 = vmatprep.subr.mxu0 0.0
    %254 = vmatpush1.msra.mxu0 %v228
    %255 = vmatprep.subr.mxu0 0.0
    %256 = vmatpush1.msra.mxu0 %v227
    %257 = vmatprep.subr.mxu0 0.0
    %258 = vmatpush1.msra.mxu0 %v226
    %259 = vmatprep.subr.mxu0 0.0
    %260 = vmatpush1.msra.mxu0 %v225
    %261 = vmatprep.subr.mxu0 0.0
    %262 = vmatpush1.msra.mxu0 %v224
    %263 = vmatprep.subr.mxu0 0.0
    %264 = vmatpush1.msra.mxu0 %v223
    %265 = vmatprep.subr.mxu0 0.0
    %266 = vmatpush1.msra.mxu0 %v222
    %267 = vmatprep.subr.mxu0 0.0
    %268 = vmatpush1.msra.mxu0 %v221
    %269 = vmatprep.subr.mxu0 0.0
    %270 = vmatpush2.msra.mxu0 0.0
    %271 = vmatprep.subr.mxu0 0.0
    %272 = vmatpush2.msra.mxu0 0.0
    %273 = vmatprep.subr.mxu0 0.0
    %274 = vmatpush2.msra.mxu0 0.0
    %275 = vmatprep.subr.mxu0 0.0
    %276 = vmatpush2.msra.mxu0 0.0
    %277 = vmatprep.subr.mxu0 0.0
    %278 = vmatpush2.msra.mxu0 0.0
    %279 = vmatprep.subr.mxu0 0.0
    %280 = vmatpush2.msra.mxu0 0.0
    %281 = vmatprep.subr.mxu0 0.0
    %282 = vmatpush2.msra.mxu0 0.0
    %283 = vmatprep.subr.mxu0 0.0
    %284 = vmatpush2.msra.mxu0 0.0
    %285 = vmatprep.subr.mxu0 0.0
    %286 = vmatpush2.msra.mxu0 0.0
    %287 = vmatprep.subr.mxu0 0.0
    %288 = vmatpush2.msra.mxu0 0.0
    %289 = vmatprep.subr.mxu0 0.0
    %290 = vmatpush2.msra.mxu0 0.0
    %291 = vmatprep.subr.mxu0 0.0
    %292 = vmatpush2.msra.mxu0 0.0
    %293 = vmatprep.subr.mxu0 0.0
    %294 = vmatpush2.msra.mxu0 0.0
    %295 = vmatprep.subr.mxu0 0.0
    %296 = vmatpush2.msra.mxu0 0.0
    %297 = vmatprep.subr.mxu0 0.0
    %298 = vmatpush2.msra.mxu0 0.0
    %299 = vmatprep.subr.mxu0 0.0
    %300 = vmatpush2.msra.mxu0 0.0
    %301 = vmatprep.mubr.f32.mxu0 0.0
    %302 = vmatmul.mubr.f32.gmra.mxu0 %v219
    %v303 = vpop.f32.mrf.mxu0
    %v304 = vadd.f32 0.0, %v303
    %v305 = vpop.f32.mrf.mxu0
    %306 = vmatprep.mubr.f32.mxu0 0.0
    %307 = vmatmul.mubr.f32.gmra.mxu0 %v220
    %v308 = vpop.f32.mrf.mxu0
    %v309 = vadd.f32 0.0, %v308
    %v310 = vpop.f32.mrf.mxu0
    %311 = vdwg.mxu0
    %v312 = vmul.f32 %v304, %v304
    %v313 = vsub.f32 %v309, %v312
    %v314 = vsub.f32 %v219, %v304
    %v315 = vadd.f32 %v313, 1e-05
    %v316 = vrsqrt.pop %v315
    %v317 = vmul.f32 %v314, %v316
    %v318 = vld [vmem:[%s3 + $0x1] sm:$0x1]
    %v319 = vlaneseq
    %v320 = vshrl.u32 %v319, 7
    %v321 = vsub.s32 0, %v320
    %v322 = vrot.slane %v318, %v321
    %v323 = vmul.f32 %v317, %v322
    %v324 = vld [vmem:[%s3 + $0x2] sm:$0x1]
    %v325 = vlaneseq
    %v326 = vshrl.u32 %v325, 7
    %v327 = vsub.s32 0, %v326
    %v328 = vrot.slane %v324, %v327
    %v329 = vadd.f32 %v323, %v328
    %v330 = vxor.u32 %v329, 2147483648
    %v331 = vmul.f32 %v330, 1.442695
    %v332 = vpow.pop %v331
    %v333 = vadd.f32 %v332, 1.0
    %v334 = vrcp.pop %v333
    %v335 = vmul.f32 1.0, %v334
    %v336 = vmul.f32 %v329, %v335
    %v337 = vpack.c.bf16 %v336, %v336
    %v338 = vld [vmem:[#allocation10] sm:$0xf]
    %v339 = vld [vmem:[#allocation10 + $0x4] sm:$0xf]
    %v340 = vld [vmem:[#allocation10 + $0x8] sm:$0xf]
    %v341 = vld [vmem:[#allocation10 + $0xc] sm:$0xf]
    %v342 = vld [vmem:[#allocation10 + $0x10] sm:$0xf]
    %v343 = vld [vmem:[#allocation10 + $0x14] sm:$0xf]
    %v344 = vld [vmem:[#allocation10 + $0x18] sm:$0xf]
    %v345 = vld [vmem:[#allocation10 + $0x1c] sm:$0xf]
    %v346 = vld [vmem:[#allocation10 + $0x20] sm:$0xf]
    %v347 = vld [vmem:[#allocation10 + $0x24] sm:$0xf]
    %v348 = vld [vmem:[#allocation10 + $0x28] sm:$0xf]
    %v349 = vld [vmem:[#allocation10 + $0x2c] sm:$0xf]
    %v350 = vld [vmem:[#allocation10 + $0x30] sm:$0xf]
    %v351 = vld [vmem:[#allocation10 + $0x34] sm:$0xf]
    %v352 = vld [vmem:[#allocation10 + $0x38] sm:$0xf]
    %v353 = vld [vmem:[#allocation10 + $0x3c] sm:$0xf]
    %v354 = vld [vmem:[%s6] sm:$0x1]
    %v356 = vlaneseq
    %v357 = vshrl.u32 %v356, 7
    %v358 = vsub.s32 0, %v357
    %v359 = vrot.slane %v354, %v358
    %v377 = vunpack.c.l.b16 %v338
    %v378 = vunpack.c.l.b16 %v339
    %v379 = vunpack.c.l.b16 %v340
    %v380 = vunpack.c.l.b16 %v341
    %v381 = vunpack.c.l.b16 %v342
    %v382 = vunpack.c.l.b16 %v343
    %v383 = vunpack.c.l.b16 %v344
    %v384 = vunpack.c.l.b16 %v345
    %v385 = vunpack.c.l.b16 %v346
    %v386 = vunpack.c.l.b16 %v347
    %v387 = vunpack.c.l.b16 %v348
    %v388 = vunpack.c.l.b16 %v349
    %v389 = vunpack.c.l.b16 %v350
    %v390 = vunpack.c.l.b16 %v351
    %v391 = vunpack.c.l.b16 %v352
    %v392 = vunpack.c.l.b16 %v353
    %v393 = vpack.c.b16 %v378, %v377
    %v394 = vpack.c.b16 %v380, %v379
    %v395 = vpack.c.b16 %v382, %v381
    %v396 = vpack.c.b16 %v384, %v383
    %v397 = vpack.c.b16 %v386, %v385
    %v398 = vpack.c.b16 %v388, %v387
    %v399 = vpack.c.b16 %v390, %v389
    %v400 = vpack.c.b16 %v392, %v391
    %409 = vmatprep.subr.bf16.mxu0 0
    %410 = vmatpush1.bf16.msra.mxu0 %v400
    %411 = vmatprep.subr.bf16.mxu0 0
    %412 = vmatpush1.bf16.msra.mxu0 %v399
    %413 = vmatprep.subr.bf16.mxu0 0
    %414 = vmatpush1.bf16.msra.mxu0 %v398
    %415 = vmatprep.subr.bf16.mxu0 0
    %416 = vmatpush1.bf16.msra.mxu0 %v397
    %417 = vmatprep.subr.bf16.mxu0 0
    %418 = vmatpush1.bf16.msra.mxu0 %v396
    %419 = vmatprep.subr.bf16.mxu0 0
    %420 = vmatpush1.bf16.msra.mxu0 %v395
    %421 = vmatprep.subr.bf16.mxu0 0
    %422 = vmatpush1.bf16.msra.mxu0 %v394
    %423 = vmatprep.subr.bf16.mxu0 0
    %424 = vmatpush1.bf16.msra.mxu0 %v393
    %425 = vmatprep.subr.bf16.mxu0 0
    %426 = vmatpush2.bf16.msra.mxu0 0
    %427 = vmatprep.subr.bf16.mxu0 0
    %428 = vmatpush2.bf16.msra.mxu0 0
    %429 = vmatprep.subr.bf16.mxu0 0
    %430 = vmatpush2.bf16.msra.mxu0 0
    %431 = vmatprep.subr.bf16.mxu0 0
    %432 = vmatpush2.bf16.msra.mxu0 0
    %433 = vmatprep.subr.bf16.mxu0 0
    %434 = vmatpush2.bf16.msra.mxu0 0
    %435 = vmatprep.subr.bf16.mxu0 0
    %436 = vmatpush2.bf16.msra.mxu0 0
    %437 = vmatprep.subr.bf16.mxu0 0
    %438 = vmatpush2.bf16.msra.mxu0 0
    %439 = vmatprep.subr.bf16.mxu0 0
    %440 = vmatpush2.bf16.msra.mxu0 0
    %441 = vmatprep.mubr.bf16.mxu0 0
    %442 = vmatmul.mubr.bf16.gmra.mxu0 %v337
    %v443 = vpop.f32.mrf.mxu0
    %v444 = vadd.f32 %v359, %v443
    %v445 = vpop.f32.mrf.mxu0
    %v446 = vpop.f32.mrf.mxu0
    %v447 = vpop.f32.mrf.mxu0
    %448 = vdwg.mxu0
    %449 = vst [vmem:[#allocation11] sm:$0xff] %v444
    // Predicated region
    $region50: #{tpu_custom_call.1} parent=1 // pred_check
      _
    $region51: #{tpu_custom_call.1} parent=1 // pred_check_branch
      %451 = sbr.rel (0) target = $region53
    $region52: #{tpu_custom_call.1} parent=1 // pred_region
      %s453 = ssub.s32 128, 128
      %454 = vsyncadd [#allocation4], %s453
      %s456 = sshll.u32 [#allocation11], 4
      %s457 = int_to_ptr.vmem [resolvable:$true] %s456
      %459 = dma.vmem_to_hbm [thread:$0]  %s457, 128, %s7, [#allocation4]
    $region53: #{tpu_custom_call.1} parent=1 // pred_fallthru
      _
    // Predicated region
    $region54: #{tpu_custom_call.1} parent=1 // pred_check
      _
    $region55: #{tpu_custom_call.1} parent=1 // pred_check_branch
      %461 = sbr.rel (0) target = $region57
    $region56: #{tpu_custom_call.1} parent=1 // pred_region
      %462 = dma.done [#allocation4], 128
    $region57: #{tpu_custom_call.1} parent=1 // pred_fallthru
      _
    %463 = vsyncpa [#allocation3], 1
    %464 = vsyncpa [#allocation6], 1
    %465 = vsyncpa [#allocation9], 1
    %466 = vsyncpa [#allocation4], 1

</llo_original>
